<compile_context>
chip_gen: v7x
topology: tpu7x:2x2x1
jax: 0.10.0
libtpu: 0.0.40
codegen_flags: <defaults>
</compile_context>

<pallas_src>
import functools

import jax
import jax.numpy as jnp
from jax.experimental import pallas as pl
from jax.experimental.pallas import tpu as pltpu


def _select_kernel(tok_ref, enc_ref, mask_ref, out_ref):
    """out = mask > 0 ? enc : tok on one (TE, TH, W) tile.

    tok_ref  : [TE, TH, W]  per-channel mask-token tile (batch-independent,
                            already in the output dtype)
    enc_ref  : [TE, TH, W]  encoder-embedding tile (batch dim squeezed)
    mask_ref : [TE, TH, W]  mask tile (>0 -> keep encoder embedding)
    out_ref  : [TE, TH, W]
    """
    out_ref[...] = jnp.where(mask_ref[...] > 0, enc_ref[...], tok_ref[...])


def _pick_tiles(E, H, W, itemsize, cap_bytes=2 * 1024 * 1024):
    """Pick (TE, TH) so one tile is <= cap_bytes.

    W is always kept full (lane-dense last dim); TH is full H or a multiple of
    8, so the (8,128)-or-full block rule is always satisfied.  Prefer full
    (H, W) planes and tile E first: that keeps each DMA a long contiguous NCHW
    run.  Only very large single-channel planes fall back to tiling H.
    """
    cap_elems = max(1, cap_bytes // itemsize)
    hw = H * W
    if E * hw <= cap_elems:
        return E, H                              # whole (E, H, W) slab fits
    if hw <= cap_elems:
        te = max(1, cap_elems // hw)
        while te > 1 and E % te:                 # prefer an even split of E
            te -= 1
        return te, H
    th = min(H, max(8, ((cap_elems // max(W, 1)) // 8) * 8))
    return 1, th


@functools.partial(jax.jit, static_argnames=("patch_size",))
def unmask_embed(enc_emb, mask, weight, bias, *, patch_size):
    """enc_emb, mask: [B, E, H, W] (PyTorch NCHW layout).

    weight: [E, Cin, ps, ps] (torch OIHW), bias: [E].
    """
    B, E, H, W = enc_emb.shape
    Cout, Cin, KH, KW = weight.shape
    assert Cout == E and KH == patch_size and KW == patch_size
    assert patch_size % 2 == 1, "spatial shapes only match for odd patch_size"
    pad = patch_size // 2
    c = 127.0 / 255.0

    # ---- Tiny setup: analytic conv of the constant image (batch-independent).
    # conv[o,y,x] = bias[o] + c * sum_{ky,kx} Vy[y,ky] * wsum[o,ky,kx] * Vx[x,kx]
    # where Vy/Vx mark which kernel taps land inside the (zero-padded) image.
    wsum = jnp.sum(weight, axis=1)                               # [E, KH, KW]
    ypos = jnp.arange(H)[:, None] + jnp.arange(KH)[None, :] - pad
    Vy = ((ypos >= 0) & (ypos < H)).astype(jnp.float32)          # [H, KH]
    xpos = jnp.arange(W)[:, None] + jnp.arange(KW)[None, :] - pad
    Vx = ((xpos >= 0) & (xpos < W)).astype(jnp.float32)          # [W, KW]
    tok = c * jnp.einsum("yk,okl,xl->oyx", Vy, wsum, Vx) + bias[:, None, None]
    tok = tok.astype(enc_emb.dtype)                              # [E, H, W]

    # ---- Streamed select kernel directly on the 4D NCHW layout (no reshapes).
    TE, TH = _pick_tiles(E, H, W, jnp.dtype(enc_emb.dtype).itemsize)
    ne, nh = pl.cdiv(E, TE), pl.cdiv(H, TH)
    # VMEM budget: 4 streams x 2 buffers x <=2 MiB tile = <=16 MiB.  Raise the
    # scoped-VMEM limit explicitly (v5e default is only 16 MiB); 32 MiB leaves
    # headroom everywhere, including v7x's 64 MiB physical VMEM.

    out = pl.pallas_call(
        _select_kernel,
        out_shape=jax.ShapeDtypeStruct((B, E, H, W), enc_emb.dtype),
        # Batch innermost (and "arbitrary") -> tok's block index repeats across
        # consecutive steps so its DMA is elided, and megacore sharding only
        # splits the e/h parallel axes.
        grid=(ne, nh, B),
        in_specs=[
            pl.BlockSpec((TE, TH, W), lambda e, h, b: (e, h, 0)),           # tok
            pl.BlockSpec((None, TE, TH, W), lambda e, h, b: (b, e, h, 0)),  # enc
            pl.BlockSpec((None, TE, TH, W), lambda e, h, b: (b, e, h, 0)),  # mask
        ],
        out_specs=pl.BlockSpec((None, TE, TH, W), lambda e, h, b: (b, e, h, 0)),
        compiler_params=pltpu.CompilerParams(
            dimension_semantics=("parallel", "parallel", "arbitrary"),
            vmem_limit_bytes=32 * 1024 * 1024),
    )(tok, enc_emb, mask)

    return out


def _reference(enc_emb_nchw, mask_nchw, weight_oihw, bias, patch_size):
    B, E, H, W = enc_emb_nchw.shape
    Cin = weight_oihw.shape[1]
    pad = patch_size // 2
    raw = jnp.full((B, Cin, H, W), 127.0 / 255.0, dtype=jnp.float32)
    conv = jax.lax.conv_general_dilated(
        raw, weight_oihw, window_strides=(1, 1),
        padding=[(pad, pad), (pad, pad)],
        dimension_numbers=("NCHW", "OIHW", "NCHW"))
    conv = conv + bias[None, :, None, None]
    return jnp.where(mask_nchw > 0, enc_emb_nchw, conv)


if __name__ == "__main__":
    # Small, deterministic config (patch_size odd so conv output matches H, W).
    B, embed_dim, in_chans, patch_size = 2, 32, 4, 3
    H = W = 16

    key = jax.random.PRNGKey(0)
    k_enc, k_mask, k_w, k_b = jax.random.split(key, 4)

    enc_emb = jax.random.normal(k_enc, (B, embed_dim, H, W), dtype=jnp.float32)
    mask = (jax.random.uniform(k_mask, (B, embed_dim, H, W)) > 0.5).astype(jnp.float32)
    # Conv params in torch Conv2d shapes: [Cout, Cin, k, k], [Cout].
    weight = 0.1 * jax.random.normal(
        k_w, (embed_dim, in_chans, patch_size, patch_size), dtype=jnp.float32)
    bias = 0.1 * jax.random.normal(k_b, (embed_dim,), dtype=jnp.float32)

    out = unmask_embed(enc_emb, mask, weight, bias, patch_size=patch_size)
    out = jax.block_until_ready(out)

    ref = _reference(enc_emb, mask, weight, bias, patch_size)
    assert out.shape == (B, embed_dim, H, W)
    assert jnp.allclose(out, ref, atol=1e-3, rtol=1e-3), "mismatch vs reference"

    print("KERNEL_OK")
</pallas_src>

<mosaic_0001>
module attributes {stable_mosaic.version = 11 : i64} {
  func.func @_select_kernel(%arg0: i32, %arg1: i32, %arg2: i32, %arg3: memref<32x16x16xf32, #tpu.memory_space<vmem>>, %arg4: memref<1x32x16x16xf32, #tpu.memory_space<vmem>>, %arg5: memref<1x32x16x16xf32, #tpu.memory_space<vmem>>, %arg6: memref<1x32x16x16xf32, #tpu.memory_space<vmem>>) attributes {dimension_semantics = [#tpu.dimension_semantics<parallel>, #tpu.dimension_semantics<parallel>, #tpu.dimension_semantics<arbitrary>], iteration_bounds = array<i64: 1, 1, 2>, scalar_prefetch = 0 : i64, scratch_operands = 0 : i64, tpu.core_type = #tpu.core_type<tc>, window_params = [{transform_indices = @transform_0, window_bounds = array<i64: 32, 16, 16>}, {transform_indices = @transform_1, window_bounds = array<i64: 1, 32, 16, 16>}, {transform_indices = @transform_2, window_bounds = array<i64: 1, 32, 16, 16>}, {transform_indices = @transform_3, window_bounds = array<i64: 1, 32, 16, 16>}]} {
    %c0 = arith.constant 0 : index
    %c0_0 = arith.constant 0 : index
    %c0_1 = arith.constant 0 : index
    %c0_2 = arith.constant 0 : index
    %0 = vector.load %arg5[%c0, %c0_0, %c0_1, %c0_2] : memref<1x32x16x16xf32, #tpu.memory_space<vmem>>, vector<1x32x16x16xf32>
    %1 = vector.shape_cast %0 : vector<1x32x16x16xf32> to vector<32x16x16xf32>
    %cst = arith.constant 0.000000e+00 : f32
    %2 = vector.broadcast %cst : f32 to vector<32x16x16xf32>
    %3 = arith.cmpf ogt, %1, %2 : vector<32x16x16xf32>
    %c0_3 = arith.constant 0 : index
    %c0_4 = arith.constant 0 : index
    %c0_5 = arith.constant 0 : index
    %c0_6 = arith.constant 0 : index
    %4 = vector.load %arg4[%c0_3, %c0_4, %c0_5, %c0_6] : memref<1x32x16x16xf32, #tpu.memory_space<vmem>>, vector<1x32x16x16xf32>
    %5 = vector.shape_cast %4 : vector<1x32x16x16xf32> to vector<32x16x16xf32>
    %c0_7 = arith.constant 0 : index
    %c0_8 = arith.constant 0 : index
    %c0_9 = arith.constant 0 : index
    %6 = vector.load %arg3[%c0_7, %c0_8, %c0_9] : memref<32x16x16xf32, #tpu.memory_space<vmem>>, vector<32x16x16xf32>
    %7 = arith.select %3, %5, %6 : vector<32x16x16xi1>, vector<32x16x16xf32>
    %c0_10 = arith.constant 0 : index
    %c0_11 = arith.constant 0 : index
    %c0_12 = arith.constant 0 : index
    %c0_13 = arith.constant 0 : index
    %8 = vector.load %arg6[%c0_10, %c0_11, %c0_12, %c0_13] : memref<1x32x16x16xf32, #tpu.memory_space<vmem>>, vector<1x32x16x16xf32>
    %9 = vector.shape_cast %8 : vector<1x32x16x16xf32> to vector<32x16x16xf32>
    %10 = vector.shape_cast %7 : vector<32x16x16xf32> to vector<1x32x16x16xf32>
    tpu.vector_store %arg6[%c0_10, %c0_11, %c0_12, %c0_13], %10 {strides = array<i32>} : memref<1x32x16x16xf32, #tpu.memory_space<vmem>>, vector<1x32x16x16xf32>,
    return
  }
  func.func @transform_0(%arg0: i32, %arg1: i32, %arg2: i32) -> (i32, i32, i32) {
    %c0_i32 = arith.constant 0 : i32
    %c0_i32_0 = arith.constant 0 : i32
    return %arg0, %arg1, %c0_i32 : i32, i32, i32
  }
  func.func @transform_1(%arg0: i32, %arg1: i32, %arg2: i32) -> (i32, i32, i32, i32) {
    %c0_i32 = arith.constant 0 : i32
    %c0_i32_0 = arith.constant 0 : i32
    return %arg2, %arg0, %arg1, %c0_i32 : i32, i32, i32, i32
  }
  func.func @transform_2(%arg0: i32, %arg1: i32, %arg2: i32) -> (i32, i32, i32, i32) {
    %c0_i32 = arith.constant 0 : i32
    %c0_i32_0 = arith.constant 0 : i32
    return %arg2, %arg0, %arg1, %c0_i32 : i32, i32, i32, i32
  }
  func.func @transform_3(%arg0: i32, %arg1: i32, %arg2: i32) -> (i32, i32, i32, i32) {
    %c0_i32 = arith.constant 0 : i32
    %c0_i32_0 = arith.constant 0 : i32
    return %arg2, %arg0, %arg1, %c0_i32 : i32, i32, i32, i32
  }
}

</mosaic_0001>

<llo_original>
// kernel: unmask_embed.1
$region0: #{unmask_embed.1}
  #allocation0 [shape = 'u32[]', space=smem, size = 0x4, offset = 0x4, fixed_abs, tag = 'smem constant byte address 0x4 - core index']
  #allocation1 [shape = 'u32[144,128]{1,0:T(1,128)}', space=vmem, size = 0x12000, scoped, tag = 'internal scratch']
  %s0 = inlined_call_operand.vmem [shape: f32[32,16,16], index: 0, kind: input, shape index: {}]
  %s1 = inlined_call_operand.vmem [shape: f32[2,32,16,16], index: 1, kind: input, shape index: {}]
  %s2 = inlined_call_operand.vmem [shape: f32[2,32,16,16], index: 2, kind: input, shape index: {}]
  %s3 = inlined_call_operand.vmem [shape: f32[2,32,16,16], index: 3, kind: output, shape index: {}]
  %s4 = sld [smem:[#allocation0]]
  $region45: #{unmask_embed.1} parent=0
    _
  %s6 = ssub.s32 1, %s4
  %s7 = scalar_select 0, %s6, %s4
  loop: start=0, step=1, limit=4
  $region2: #{unmask_embed.1} parent=0 // loop_pre_header
    _
  $region3: #{unmask_embed.1} parent=0 // loop_header
    %s9 = sphi 0, %s13
    %p10 = scmp.ge.s32.totalorder %s9, 4
    %s16 = sphi 0, %s35
    %s17 = sphi 0, %s31
    %s18 = sphi 0, %s27
    %s19 = sphi 0, %s16
    %s20 = sphi 0, %s17
    %s21 = sphi 0, %s18
    %s22 = sphi 0, %s19
    %s23 = sphi 0, %s20
    %s24 = sphi 0, %s21
    %s40 = sphi 0, %s42
    %s43 = sphi 0, %s40
    %s44 = sphi 0, %s43
    %s60 = sphi 0, %s44
    %s70 = sphi 0, %s72
    %s73 = sphi 0, %s70
    %s74 = sphi 0, %s73
    %s90 = sphi 0, %s74
    %s100 = sphi 0, %s102
    %s103 = sphi 0, %s100
    %s104 = sphi 0, %s103
    %s120 = sphi 0, %s104
    %s130 = sphi 0, %s132
    %s133 = sphi 0, %s130
    %s134 = sphi 0, %s133
    %s150 = sphi 0, %s134
  $region4: #{unmask_embed.1} parent=0 // loop_header_branch
    %12 = sbr.rel (%p10) target = $region8
  $region5: #{unmask_embed.1} parent=0 // loop_body
    %s14 = ssub.s32 %s9, 1
    %s15 = ssub.s32 %s9, 2
    %s25 = sadd.s32 1, %s18
    %p26 = scmp.ge.s32.totalorder %s25, 2
    %s27 = scalar_select %p26, 0, %s25
    %s28 = sadd.s32 1, %s17
    %s29 = scalar_select %p26, %s28, %s17
    %p30 = scmp.ge.s32.totalorder %s29, 1
    %s31 = scalar_select %p30, 0, %s29
    %s32 = sadd.s32 1, %s16
    %s33 = scalar_select %p30, %s32, %s16
    %p34 = scmp.ge.s32.totalorder %s33, 1
    %s35 = scalar_select %p34, 0, %s33
    %s36 = ssub.s32 %s16, %s35
    %s37 = ssub.s32 %s17, %s31
    %s38 = sor.u32 %s36, %s37
    %p39 = scmp.eq.s32.totalorder %s38, 0
    %s41 = sadd.s32 %s40, 1
    %s42 = scalar_select %p39, %s40, %s41
    %p45 = pneg %p39
    %p46 = scmp.eq.s32.totalorder %s9, 1
    %p47 = por %p45, %p46
    %p48 = scmp.ne.s32.totalorder %s40, %s43
    %p49 = scmp.eq.s32.totalorder %s9, 0
    %p50 = por %p48, %p49
    %p51 = scmp.ne.s32.totalorder %s40, %s43
    %p52 = scmp.eq.s32.totalorder %s14, 1
    %p53 = por %p51, %p52
    %p54 = scmp.ne.s32.totalorder %s43, %s44
    %p55 = scmp.eq.s32.totalorder %s14, 0
    %p56 = por %p54, %p55
    %p57 = scmp.ne.s32.totalorder %s43, %s44
    %p58 = scmp.eq.s32.totalorder %s15, 1
    %p59 = por %p57, %p58
    %p61 = scmp.ne.s32.totalorder %s44, %s60
    %p62 = scmp.eq.s32.totalorder %s15, 0
    %p63 = por %p61, %p62
    %s64 = ssub.s32 %s18, %s27
    %s65 = ssub.s32 %s16, %s35
    %s66 = sor.u32 %s64, %s65
    %s67 = ssub.s32 %s17, %s31
    %s68 = sor.u32 %s66, %s67
    %p69 = scmp.eq.s32.totalorder %s68, 0
    %s71 = sadd.s32 %s70, 1
    %s72 = scalar_select %p69, %s70, %s71
    %p75 = pneg %p69
    %p76 = scmp.eq.s32.totalorder %s9, 1
    %p77 = por %p75, %p76
    %p78 = scmp.ne.s32.totalorder %s70, %s73
    %p79 = scmp.eq.s32.totalorder %s9, 0
    %p80 = por %p78, %p79
    %p81 = scmp.ne.s32.totalorder %s70, %s73
    %p82 = scmp.eq.s32.totalorder %s14, 1
    %p83 = por %p81, %p82
    %p84 = scmp.ne.s32.totalorder %s73, %s74
    %p85 = scmp.eq.s32.totalorder %s14, 0
    %p86 = por %p84, %p85
    %p87 = scmp.ne.s32.totalorder %s73, %s74
    %p88 = scmp.eq.s32.totalorder %s15, 1
    %p89 = por %p87, %p88
    %p91 = scmp.ne.s32.totalorder %s74, %s90
    %p92 = scmp.eq.s32.totalorder %s15, 0
    %p93 = por %p91, %p92
    %s94 = ssub.s32 %s18, %s27
    %s95 = ssub.s32 %s16, %s35
    %s96 = sor.u32 %s94, %s95
    %s97 = ssub.s32 %s17, %s31
    %s98 = sor.u32 %s96, %s97
    %p99 = scmp.eq.s32.totalorder %s98, 0
    %s101 = sadd.s32 %s100, 1
    %s102 = scalar_select %p99, %s100, %s101
    %p105 = pneg %p99
    %p106 = scmp.eq.s32.totalorder %s9, 1
    %p107 = por %p105, %p106
    %p108 = scmp.ne.s32.totalorder %s100, %s103
    %p109 = scmp.eq.s32.totalorder %s9, 0
    %p110 = por %p108, %p109
    %p111 = scmp.ne.s32.totalorder %s100, %s103
    %p112 = scmp.eq.s32.totalorder %s14, 1
    %p113 = por %p111, %p112
    %p114 = scmp.ne.s32.totalorder %s103, %s104
    %p115 = scmp.eq.s32.totalorder %s14, 0
    %p116 = por %p114, %p115
    %p117 = scmp.ne.s32.totalorder %s103, %s104
    %p118 = scmp.eq.s32.totalorder %s15, 1
    %p119 = por %p117, %p118
    %p121 = scmp.ne.s32.totalorder %s104, %s120
    %p122 = scmp.eq.s32.totalorder %s15, 0
    %p123 = por %p121, %p122
    %s124 = ssub.s32 %s18, %s27
    %s125 = ssub.s32 %s16, %s35
    %s126 = sor.u32 %s124, %s125
    %s127 = ssub.s32 %s17, %s31
    %s128 = sor.u32 %s126, %s127
    %p129 = scmp.eq.s32.totalorder %s128, 0
    %s131 = sadd.s32 %s130, 1
    %s132 = scalar_select %p129, %s130, %s131
    %p135 = pneg %p129
    %p136 = scmp.eq.s32.totalorder %s9, 1
    %p137 = por %p135, %p136
    %p138 = scmp.ne.s32.totalorder %s130, %s133
    %p139 = scmp.eq.s32.totalorder %s9, 0
    %p140 = por %p138, %p139
    %p141 = scmp.ne.s32.totalorder %s130, %s133
    %p142 = scmp.eq.s32.totalorder %s14, 1
    %p143 = por %p141, %p142
    %p144 = scmp.ne.s32.totalorder %s133, %s134
    %p145 = scmp.eq.s32.totalorder %s14, 0
    %p146 = por %p144, %p145
    %p147 = scmp.ne.s32.totalorder %s133, %s134
    %p148 = scmp.eq.s32.totalorder %s15, 1
    %p149 = por %p147, %p148
    %p151 = scmp.ne.s32.totalorder %s134, %s150
    %p152 = scmp.eq.s32.totalorder %s15, 0
    %p153 = por %p151, %p152
    %p154 = scmp.le.s32.totalorder 1, %s9
    %p155 = scmp.lt.s32.totalorder %s9, 3
    %p156 = pnand %p154, %p155
    %p157 = pneg %p156
    // Predicated region
    $region9: #{unmask_embed.1} parent=5 // pred_check
      _
    $region10: #{unmask_embed.1} parent=5 // pred_check_branch
      %159 = sbr.rel (%p156) target = $region12
    $region11: #{unmask_embed.1} parent=5 // pred_region
      %s160 = ssub.s32 %s9, 1
      // Predicated region
      $region13: #{unmask_embed.1} parent=11 // pred_check
        %p161 = pneg %p56
      $region14: #{unmask_embed.1} parent=11 // pred_check_branch
        %163 = sbr.rel (%p161) target = $region16
      $region15: #{unmask_embed.1} parent=11 // pred_region
        %s164 = smul.u32 32, %s19
        %s165 = smul.u32 2, %s20
        %p166 = scmp.lt.s32.totalorder %s164, 31
        %s167 = scalar_select %p166, %s164, 31
        %p168 = scmp.lt.s32.totalorder %s165, 1
        %s169 = scalar_select %p168, %s165, 1
        %s170 = smul.addr %s167, 2
        %s171 = sadd.s32 %s169, %s170
        %s172 = smul.addr %s171, 8
        %s173 = scalar_lea.vmem %s0, %s172
        %s174 = smul.u32 32, %s19
        %s175 = smul.u32 2, %s20
      $region16: #{unmask_embed.1} parent=11 // pred_fallthru
        _
    $region12: #{unmask_embed.1} parent=5 // pred_fallthru
      _
    %p176 = scmp.lt.s32.totalorder %s9, 2
    // Predicated region
    $region17: #{unmask_embed.1} parent=5 // pred_check
      %p177 = pneg %p176
    $region18: #{unmask_embed.1} parent=5 // pred_check_branch
      %179 = sbr.rel (%p177) target = $region20
    $region19: #{unmask_embed.1} parent=5 // pred_region
      // Predicated region
      $region21: #{unmask_embed.1} parent=19 // pred_check
        %p180 = pneg %p80
      $region22: #{unmask_embed.1} parent=19 // pred_check_branch
        %182 = sbr.rel (%p180) target = $region24
      $region23: #{unmask_embed.1} parent=19 // pred_region
        %s183 = smul.u32 32, %s16
        %s184 = smul.u32 2, %s17
        %p185 = scmp.lt.s32.totalorder %s18, 1
        %s186 = scalar_select %p185, %s18, 1
        %p187 = scmp.lt.s32.totalorder %s183, 31
        %s188 = scalar_select %p187, %s183, 31
        %p189 = scmp.lt.s32.totalorder %s184, 1
        %s190 = scalar_select %p189, %s184, 1
        %s191 = smul.addr %s188, 2
        %s192 = sadd.s32 %s190, %s191
        %s193 = smul.addr %s186, 64
        %s194 = sadd.s32 %s192, %s193
        %s195 = smul.addr %s194, 8
        %s196 = scalar_lea.vmem %s1, %s195
        %s197 = smul.u32 32, %s16
        %s198 = smul.u32 2, %s17
      $region24: #{unmask_embed.1} parent=19 // pred_fallthru
        _
      // Predicated region
      $region25: #{unmask_embed.1} parent=19 // pred_check
        %p199 = pneg %p110
      $region26: #{unmask_embed.1} parent=19 // pred_check_branch
        %201 = sbr.rel (%p199) target = $region28
      $region27: #{unmask_embed.1} parent=19 // pred_region
        %s202 = smul.u32 32, %s16
        %s203 = smul.u32 2, %s17
        %p204 = scmp.lt.s32.totalorder %s18, 1
        %s205 = scalar_select %p204, %s18, 1
        %p206 = scmp.lt.s32.totalorder %s202, 31
        %s207 = scalar_select %p206, %s202, 31
        %p208 = scmp.lt.s32.totalorder %s203, 1
        %s209 = scalar_select %p208, %s203, 1
        %s210 = smul.addr %s207, 2
        %s211 = sadd.s32 %s209, %s210
        %s212 = smul.addr %s205, 64
        %s213 = sadd.s32 %s211, %s212
        %s214 = smul.addr %s213, 8
        %s215 = scalar_lea.vmem %s2, %s214
        %s216 = smul.u32 32, %s16
        %s217 = smul.u32 2, %s17
      $region28: #{unmask_embed.1} parent=19 // pred_fallthru
        _
    $region20: #{unmask_embed.1} parent=5 // pred_fallthru
      _
    %p218 = scmp.le.s32.totalorder 1, %s9
    %p219 = scmp.lt.s32.totalorder %s9, 3
    %p220 = pnand %p218, %p219
    %p221 = pneg %p220
    // Predicated region
    $region29: #{unmask_embed.1} parent=5 // pred_check
      _
    $region30: #{unmask_embed.1} parent=5 // pred_check_branch
      %223 = sbr.rel (%p220) target = $region32
    $region31: #{unmask_embed.1} parent=5 // pred_region
      %s224 = ssub.s32 %s9, 1
      %s225 = smul.u32 32, %s19
      %s226 = smul.u32 2, %s20
      %p227 = scmp.lt.s32.totalorder %s225, 31
      %s228 = scalar_select %p227, %s225, 31
      %p229 = scmp.lt.s32.totalorder %s226, 1
      %s230 = scalar_select %p229, %s226, 1
      %s231 = smul.addr %s228, 2
      %s232 = sadd.s32 %s230, %s231
      %s233 = smul.addr %s232, 8
      %s234 = scalar_lea.vmem %s0, %s233
      %p235 = pneg %p56
      %p236 = pneg %p53
      %s237 = smul.u32 32, %s19
      %s238 = smul.u32 2, %s20
      %p239 = scmp.lt.s32.totalorder %s21, 1
      %s240 = scalar_select %p239, %s21, 1
      %p241 = scmp.lt.s32.totalorder %s237, 31
      %s242 = scalar_select %p241, %s237, 31
      %p243 = scmp.lt.s32.totalorder %s238, 1
      %s244 = scalar_select %p243, %s238, 1
      %s245 = smul.addr %s242, 2
      %s246 = sadd.s32 %s244, %s245
      %s247 = smul.addr %s240, 64
      %s248 = sadd.s32 %s246, %s247
      %s249 = smul.addr %s248, 8
      %s250 = scalar_lea.vmem %s1, %s249
      %p251 = pneg %p86
      %p252 = pneg %p83
      %s253 = smul.u32 32, %s19
      %s254 = smul.u32 2, %s20
      %p255 = scmp.lt.s32.totalorder %s21, 1
      %s256 = scalar_select %p255, %s21, 1
      %p257 = scmp.lt.s32.totalorder %s253, 31
      %s258 = scalar_select %p257, %s253, 31
      %p259 = scmp.lt.s32.totalorder %s254, 1
      %s260 = scalar_select %p259, %s254, 1
      %s261 = smul.addr %s258, 2
      %s262 = sadd.s32 %s260, %s261
      %s263 = smul.addr %s256, 64
      %s264 = sadd.s32 %s262, %s263
      %s265 = smul.addr %s264, 8
      %s266 = scalar_lea.vmem %s2, %s265
      %p267 = pneg %p116
      %p268 = pneg %p113
      %p269 = pneg %p146
      %p270 = pneg %p143
      %s271 = smul.u32 32, %s19
      %s272 = smul.u32 2, %s20
      %p273 = scmp.lt.s32.totalorder %s21, 1
      %s274 = scalar_select %p273, %s21, 1
      %p275 = scmp.lt.s32.totalorder %s271, 31
      %s276 = scalar_select %p275, %s271, 31
      %p277 = scmp.lt.s32.totalorder %s272, 1
      %s278 = scalar_select %p277, %s272, 1
      %s279 = smul.addr %s276, 2
      %s280 = sadd.s32 %s278, %s279
      %s281 = smul.addr %s274, 64
      %s282 = sadd.s32 %s280, %s281
      %s283 = smul.addr %s282, 8
      %s284 = scalar_lea.vmem %s3, %s283
      %s285 = smul.u32 32, %s19
      %s286 = smul.u32 2, %s20
      %p287 = scmp.lt.s32.totalorder %s285, 31
      %s288 = scalar_select %p287, %s285, 31
      %p289 = scmp.lt.s32.totalorder %s286, 1
      %s290 = scalar_select %p289, %s286, 1
      %s291 = smul.addr %s288, 2
      %s292 = sadd.s32 %s290, %s291
      %s293 = smul.addr %s292, 8
      %s294 = scalar_lea.vmem %s0, %s293
      %s295 = smul.u32 32, %s19
      %s296 = smul.u32 2, %s20
      %s297 = smul.u32 32, %s19
      %s298 = smul.u32 2, %s20
      %p299 = scmp.lt.s32.totalorder %s21, 1
      %s300 = scalar_select %p299, %s21, 1
      %p301 = scmp.lt.s32.totalorder %s297, 31
      %s302 = scalar_select %p301, %s297, 31
      %p303 = scmp.lt.s32.totalorder %s298, 1
      %s304 = scalar_select %p303, %s298, 1
      %s305 = smul.addr %s302, 2
      %s306 = sadd.s32 %s304, %s305
      %s307 = smul.addr %s300, 64
      %s308 = sadd.s32 %s306, %s307
      %s309 = smul.addr %s308, 8
      %s310 = scalar_lea.vmem %s1, %s309
      %s311 = smul.u32 32, %s19
      %s312 = smul.u32 2, %s20
      %s313 = smul.u32 32, %s19
      %s314 = smul.u32 2, %s20
      %p315 = scmp.lt.s32.totalorder %s21, 1
      %s316 = scalar_select %p315, %s21, 1
      %p317 = scmp.lt.s32.totalorder %s313, 31
      %s318 = scalar_select %p317, %s313, 31
      %p319 = scmp.lt.s32.totalorder %s314, 1
      %s320 = scalar_select %p319, %s314, 1
      %s321 = smul.addr %s318, 2
      %s322 = sadd.s32 %s320, %s321
      %s323 = smul.addr %s316, 64
      %s324 = sadd.s32 %s322, %s323
      %s325 = smul.addr %s324, 8
      %s326 = scalar_lea.vmem %s2, %s325
      %s327 = smul.u32 32, %s19
      %s328 = smul.u32 2, %s20
      %s329 = smul.u32 32, %s19
      %s330 = smul.u32 2, %s20
      %p331 = scmp.lt.s32.totalorder %s21, 1
      %s332 = scalar_select %p331, %s21, 1
      %p333 = scmp.lt.s32.totalorder %s329, 31
      %s334 = scalar_select %p333, %s329, 31
      %p335 = scmp.lt.s32.totalorder %s330, 1
      %s336 = scalar_select %p335, %s330, 1
      %s337 = smul.addr %s334, 2
      %s338 = sadd.s32 %s336, %s337
      %s339 = smul.addr %s332, 64
      %s340 = sadd.s32 %s338, %s339
      %s341 = smul.addr %s340, 8
      %s342 = scalar_lea.vmem %s3, %s341
      %s343 = smul.u32 32, %s19
      %s344 = smul.u32 2, %s20
      %v345 = vld [vmem:[%s326] sm:$0xff]
      %v346 = vld [vmem:[%s326 + $0x8] sm:$0xff]
      %v347 = vld [vmem:[%s326 + $0x10] sm:$0xff]
      %v348 = vld [vmem:[%s326 + $0x18] sm:$0xff]
      %v349 = vld [vmem:[%s326 + $0x20] sm:$0xff]
      %v350 = vld [vmem:[%s326 + $0x28] sm:$0xff]
      %v351 = vld [vmem:[%s326 + $0x30] sm:$0xff]
      %v352 = vld [vmem:[%s326 + $0x38] sm:$0xff]
      %v353 = vld [vmem:[%s326 + $0x40] sm:$0xff]
      %v354 = vld [vmem:[%s326 + $0x48] sm:$0xff]
      %v355 = vld [vmem:[%s326 + $0x50] sm:$0xff]
      %v356 = vld [vmem:[%s326 + $0x58] sm:$0xff]
      %v357 = vld [vmem:[%s326 + $0x60] sm:$0xff]
      %v358 = vld [vmem:[%s326 + $0x68] sm:$0xff]
      %v359 = vld [vmem:[%s326 + $0x70] sm:$0xff]
      %v360 = vld [vmem:[%s326 + $0x78] sm:$0xff]
      %v361 = vld [vmem:[%s326 + $0x80] sm:$0xff]
      %v362 = vld [vmem:[%s326 + $0x88] sm:$0xff]
      %v363 = vld [vmem:[%s326 + $0x90] sm:$0xff]
      %v364 = vld [vmem:[%s326 + $0x98] sm:$0xff]
      %v365 = vld [vmem:[%s326 + $0xa0] sm:$0xff]
      %v366 = vld [vmem:[%s326 + $0xa8] sm:$0xff]
      %v367 = vld [vmem:[%s326 + $0xb0] sm:$0xff]
      %v368 = vld [vmem:[%s326 + $0xb8] sm:$0xff]
      %v369 = vld [vmem:[%s326 + $0xc0] sm:$0xff]
      %v370 = vld [vmem:[%s326 + $0xc8] sm:$0xff]
      %v371 = vld [vmem:[%s326 + $0xd0] sm:$0xff]
      %v372 = vld [vmem:[%s326 + $0xd8] sm:$0xff]
      %v373 = vld [vmem:[%s326 + $0xe0] sm:$0xff]
      %v374 = vld [vmem:[%s326 + $0xe8] sm:$0xff]
      %v375 = vld [vmem:[%s326 + $0xf0] sm:$0xff]
      %v376 = vld [vmem:[%s326 + $0xf8] sm:$0xff]
      %v377 = vld [vmem:[%s326 + $0x100] sm:$0xff]
      %v378 = vld [vmem:[%s326 + $0x108] sm:$0xff]
      %v379 = vld [vmem:[%s326 + $0x110] sm:$0xff]
      %v380 = vld [vmem:[%s326 + $0x118] sm:$0xff]
      %v381 = vld [vmem:[%s326 + $0x120] sm:$0xff]
      %v382 = vld [vmem:[%s326 + $0x128] sm:$0xff]
      %v383 = vld [vmem:[%s326 + $0x130] sm:$0xff]
      %v384 = vld [vmem:[%s326 + $0x138] sm:$0xff]
      %v385 = vld [vmem:[%s326 + $0x140] sm:$0xff]
      %v386 = vld [vmem:[%s326 + $0x148] sm:$0xff]
      %v387 = vld [vmem:[%s326 + $0x150] sm:$0xff]
      %v388 = vld [vmem:[%s326 + $0x158] sm:$0xff]
      %v389 = vld [vmem:[%s326 + $0x160] sm:$0xff]
      %v390 = vld [vmem:[%s326 + $0x168] sm:$0xff]
      %v391 = vld [vmem:[%s326 + $0x170] sm:$0xff]
      %v392 = vld [vmem:[%s326 + $0x178] sm:$0xff]
      %v393 = vld [vmem:[%s326 + $0x180] sm:$0xff]
      %v394 = vld [vmem:[%s326 + $0x188] sm:$0xff]
      %v395 = vld [vmem:[%s326 + $0x190] sm:$0xff]
      %v396 = vld [vmem:[%s326 + $0x198] sm:$0xff]
      %v397 = vld [vmem:[%s326 + $0x1a0] sm:$0xff]
      %v398 = vld [vmem:[%s326 + $0x1a8] sm:$0xff]
      %v399 = vld [vmem:[%s326 + $0x1b0] sm:$0xff]
      %v400 = vld [vmem:[%s326 + $0x1b8] sm:$0xff]
      %v401 = vld [vmem:[%s326 + $0x1c0] sm:$0xff]
      %v402 = vld [vmem:[%s326 + $0x1c8] sm:$0xff]
      %v403 = vld [vmem:[%s326 + $0x1d0] sm:$0xff]
      %v404 = vld [vmem:[%s326 + $0x1d8] sm:$0xff]
      %v405 = vld [vmem:[%s326 + $0x1e0] sm:$0xff]
      %v406 = vld [vmem:[%s326 + $0x1e8] sm:$0xff]
      %v407 = vld [vmem:[%s326 + $0x1f0] sm:$0xff]
      %v408 = vld [vmem:[%s326 + $0x1f8] sm:$0xff]
      %vm409 = vcmp.gt.f32.partialorder %v345, 0.0
      %vm410 = vcmp.gt.f32.partialorder %v346, 0.0
      %vm411 = vcmp.gt.f32.partialorder %v347, 0.0
      %vm412 = vcmp.gt.f32.partialorder %v348, 0.0
      %vm413 = vcmp.gt.f32.partialorder %v349, 0.0
      %vm414 = vcmp.gt.f32.partialorder %v350, 0.0
      %vm415 = vcmp.gt.f32.partialorder %v351, 0.0
      %vm416 = vcmp.gt.f32.partialorder %v352, 0.0
      %vm417 = vcmp.gt.f32.partialorder %v353, 0.0
      %vm418 = vcmp.gt.f32.partialorder %v354, 0.0
      %vm419 = vcmp.gt.f32.partialorder %v355, 0.0
      %vm420 = vcmp.gt.f32.partialorder %v356, 0.0
      %vm421 = vcmp.gt.f32.partialorder %v357, 0.0
      %vm422 = vcmp.gt.f32.partialorder %v358, 0.0
      %vm423 = vcmp.gt.f32.partialorder %v359, 0.0
      %vm424 = vcmp.gt.f32.partialorder %v360, 0.0
      %vm425 = vcmp.gt.f32.partialorder %v361, 0.0
      %vm426 = vcmp.gt.f32.partialorder %v362, 0.0
      %vm427 = vcmp.gt.f32.partialorder %v363, 0.0
      %vm428 = vcmp.gt.f32.partialorder %v364, 0.0
      %vm429 = vcmp.gt.f32.partialorder %v365, 0.0
      %vm430 = vcmp.gt.f32.partialorder %v366, 0.0
      %vm431 = vcmp.gt.f32.partialorder %v367, 0.0
      %vm432 = vcmp.gt.f32.partialorder %v368, 0.0
      %vm433 = vcmp.gt.f32.partialorder %v369, 0.0
      %vm434 = vcmp.gt.f32.partialorder %v370, 0.0
      %vm435 = vcmp.gt.f32.partialorder %v371, 0.0
      %vm436 = vcmp.gt.f32.partialorder %v372, 0.0
      %vm437 = vcmp.gt.f32.partialorder %v373, 0.0
      %vm438 = vcmp.gt.f32.partialorder %v374, 0.0
      %vm439 = vcmp.gt.f32.partialorder %v375, 0.0
      %vm440 = vcmp.gt.f32.partialorder %v376, 0.0
      %vm441 = vcmp.gt.f32.partialorder %v377, 0.0
      %vm442 = vcmp.gt.f32.partialorder %v378, 0.0
      %vm443 = vcmp.gt.f32.partialorder %v379, 0.0
      %vm444 = vcmp.gt.f32.partialorder %v380, 0.0
      %vm445 = vcmp.gt.f32.partialorder %v381, 0.0
      %vm446 = vcmp.gt.f32.partialorder %v382, 0.0
      %vm447 = vcmp.gt.f32.partialorder %v383, 0.0
      %vm448 = vcmp.gt.f32.partialorder %v384, 0.0
      %vm449 = vcmp.gt.f32.partialorder %v385, 0.0
      %vm450 = vcmp.gt.f32.partialorder %v386, 0.0
      %vm451 = vcmp.gt.f32.partialorder %v387, 0.0
      %vm452 = vcmp.gt.f32.partialorder %v388, 0.0
      %vm453 = vcmp.gt.f32.partialorder %v389, 0.0
      %vm454 = vcmp.gt.f32.partialorder %v390, 0.0
      %vm455 = vcmp.gt.f32.partialorder %v391, 0.0
      %vm456 = vcmp.gt.f32.partialorder %v392, 0.0
      %vm457 = vcmp.gt.f32.partialorder %v393, 0.0
      %vm458 = vcmp.gt.f32.partialorder %v394, 0.0
      %vm459 = vcmp.gt.f32.partialorder %v395, 0.0
      %vm460 = vcmp.gt.f32.partialorder %v396, 0.0
      %vm461 = vcmp.gt.f32.partialorder %v397, 0.0
      %vm462 = vcmp.gt.f32.partialorder %v398, 0.0
      %vm463 = vcmp.gt.f32.partialorder %v399, 0.0
      %vm464 = vcmp.gt.f32.partialorder %v400, 0.0
      %vm465 = vcmp.gt.f32.partialorder %v401, 0.0
      %vm466 = vcmp.gt.f32.partialorder %v402, 0.0
      %vm467 = vcmp.gt.f32.partialorder %v403, 0.0
      %vm468 = vcmp.gt.f32.partialorder %v404, 0.0
      %vm469 = vcmp.gt.f32.partialorder %v405, 0.0
      %vm470 = vcmp.gt.f32.partialorder %v406, 0.0
      %vm471 = vcmp.gt.f32.partialorder %v407, 0.0
      %vm472 = vcmp.gt.f32.partialorder %v408, 0.0
      %v473 = vld [vmem:[%s310] sm:$0xff]
      %v474 = vld [vmem:[%s310 + $0x8] sm:$0xff]
      %v475 = vld [vmem:[%s310 + $0x10] sm:$0xff]
      %v476 = vld [vmem:[%s310 + $0x18] sm:$0xff]
      %v477 = vld [vmem:[%s310 + $0x20] sm:$0xff]
      %v478 = vld [vmem:[%s310 + $0x28] sm:$0xff]
      %v479 = vld [vmem:[%s310 + $0x30] sm:$0xff]
      %v480 = vld [vmem:[%s310 + $0x38] sm:$0xff]
      %v481 = vld [vmem:[%s310 + $0x40] sm:$0xff]
      %v482 = vld [vmem:[%s310 + $0x48] sm:$0xff]
      %v483 = vld [vmem:[%s310 + $0x50] sm:$0xff]
      %v484 = vld [vmem:[%s310 + $0x58] sm:$0xff]
      %v485 = vld [vmem:[%s310 + $0x60] sm:$0xff]
      %v486 = vld [vmem:[%s310 + $0x68] sm:$0xff]
      %v487 = vld [vmem:[%s310 + $0x70] sm:$0xff]
      %v488 = vld [vmem:[%s310 + $0x78] sm:$0xff]
      %v489 = vld [vmem:[%s310 + $0x80] sm:$0xff]
      %v490 = vld [vmem:[%s310 + $0x88] sm:$0xff]
      %v491 = vld [vmem:[%s310 + $0x90] sm:$0xff]
      %v492 = vld [vmem:[%s310 + $0x98] sm:$0xff]
      %v493 = vld [vmem:[%s310 + $0xa0] sm:$0xff]
      %v494 = vld [vmem:[%s310 + $0xa8] sm:$0xff]
      %v495 = vld [vmem:[%s310 + $0xb0] sm:$0xff]
      %v496 = vld [vmem:[%s310 + $0xb8] sm:$0xff]
      %v497 = vld [vmem:[%s310 + $0xc0] sm:$0xff]
      %v498 = vld [vmem:[%s310 + $0xc8] sm:$0xff]
      %v499 = vld [vmem:[%s310 + $0xd0] sm:$0xff]
      %v500 = vld [vmem:[%s310 + $0xd8] sm:$0xff]
      %v501 = vld [vmem:[%s310 + $0xe0] sm:$0xff]
      %v502 = vld [vmem:[%s310 + $0xe8] sm:$0xff]
      %v503 = vld [vmem:[%s310 + $0xf0] sm:$0xff]
      %v504 = vld [vmem:[%s310 + $0xf8] sm:$0xff]
      %v505 = vld [vmem:[%s310 + $0x100] sm:$0xff]
      %v506 = vld [vmem:[%s310 + $0x108] sm:$0xff]
      %v507 = vld [vmem:[%s310 + $0x110] sm:$0xff]
      %v508 = vld [vmem:[%s310 + $0x118] sm:$0xff]
      %v509 = vld [vmem:[%s310 + $0x120] sm:$0xff]
      %v510 = vld [vmem:[%s310 + $0x128] sm:$0xff]
      %v511 = vld [vmem:[%s310 + $0x130] sm:$0xff]
      %v512 = vld [vmem:[%s310 + $0x138] sm:$0xff]
      %v513 = vld [vmem:[%s310 + $0x140] sm:$0xff]
      %v514 = vld [vmem:[%s310 + $0x148] sm:$0xff]
      %v515 = vld [vmem:[%s310 + $0x150] sm:$0xff]
      %v516 = vld [vmem:[%s310 + $0x158] sm:$0xff]
      %v517 = vld [vmem:[%s310 + $0x160] sm:$0xff]
      %v518 = vld [vmem:[%s310 + $0x168] sm:$0xff]
      %v519 = vld [vmem:[%s310 + $0x170] sm:$0xff]
      %v520 = vld [vmem:[%s310 + $0x178] sm:$0xff]
      %v521 = vld [vmem:[%s310 + $0x180] sm:$0xff]
      %v522 = vld [vmem:[%s310 + $0x188] sm:$0xff]
      %v523 = vld [vmem:[%s310 + $0x190] sm:$0xff]
      %v524 = vld [vmem:[%s310 + $0x198] sm:$0xff]
      %v525 = vld [vmem:[%s310 + $0x1a0] sm:$0xff]
      %v526 = vld [vmem:[%s310 + $0x1a8] sm:$0xff]
      %v527 = vld [vmem:[%s310 + $0x1b0] sm:$0xff]
      %v528 = vld [vmem:[%s310 + $0x1b8] sm:$0xff]
      %v529 = vld [vmem:[%s310 + $0x1c0] sm:$0xff]
      %v530 = vld [vmem:[%s310 + $0x1c8] sm:$0xff]
      %v531 = vld [vmem:[%s310 + $0x1d0] sm:$0xff]
      %v532 = vld [vmem:[%s310 + $0x1d8] sm:$0xff]
      %v533 = vld [vmem:[%s310 + $0x1e0] sm:$0xff]
      %v534 = vld [vmem:[%s310 + $0x1e8] sm:$0xff]
      %v535 = vld [vmem:[%s310 + $0x1f0] sm:$0xff]
      %v536 = vld [vmem:[%s310 + $0x1f8] sm:$0xff]
      %v537 = vld [vmem:[%s294] sm:$0xff]
      %v538 = vld [vmem:[%s294 + $0x8] sm:$0xff]
      %v539 = vld [vmem:[%s294 + $0x10] sm:$0xff]
      %v540 = vld [vmem:[%s294 + $0x18] sm:$0xff]
      %v541 = vld [vmem:[%s294 + $0x20] sm:$0xff]
      %v542 = vld [vmem:[%s294 + $0x28] sm:$0xff]
      %v543 = vld [vmem:[%s294 + $0x30] sm:$0xff]
      %v544 = vld [vmem:[%s294 + $0x38] sm:$0xff]
      %v545 = vld [vmem:[%s294 + $0x40] sm:$0xff]
      %v546 = vld [vmem:[%s294 + $0x48] sm:$0xff]
      %v547 = vld [vmem:[%s294 + $0x50] sm:$0xff]
      %v548 = vld [vmem:[%s294 + $0x58] sm:$0xff]
      %v549 = vld [vmem:[%s294 + $0x60] sm:$0xff]
      %v550 = vld [vmem:[%s294 + $0x68] sm:$0xff]
      %v551 = vld [vmem:[%s294 + $0x70] sm:$0xff]
      %v552 = vld [vmem:[%s294 + $0x78] sm:$0xff]
      %v553 = vld [vmem:[%s294 + $0x80] sm:$0xff]
      %v554 = vld [vmem:[%s294 + $0x88] sm:$0xff]
      %v555 = vld [vmem:[%s294 + $0x90] sm:$0xff]
      %v556 = vld [vmem:[%s294 + $0x98] sm:$0xff]
      %v557 = vld [vmem:[%s294 + $0xa0] sm:$0xff]
      %v558 = vld [vmem:[%s294 + $0xa8] sm:$0xff]
      %v559 = vld [vmem:[%s294 + $0xb0] sm:$0xff]
      %v560 = vld [vmem:[%s294 + $0xb8] sm:$0xff]
      %v561 = vld [vmem:[%s294 + $0xc0] sm:$0xff]
      %v562 = vld [vmem:[%s294 + $0xc8] sm:$0xff]
      %v563 = vld [vmem:[%s294 + $0xd0] sm:$0xff]
      %v564 = vld [vmem:[%s294 + $0xd8] sm:$0xff]
      %v565 = vld [vmem:[%s294 + $0xe0] sm:$0xff]
      %v566 = vld [vmem:[%s294 + $0xe8] sm:$0xff]
      %v567 = vld [vmem:[%s294 + $0xf0] sm:$0xff]
      %v568 = vld [vmem:[%s294 + $0xf8] sm:$0xff]
      %v569 = vld [vmem:[%s294 + $0x100] sm:$0xff]
      %v570 = vld [vmem:[%s294 + $0x108] sm:$0xff]
      %v571 = vld [vmem:[%s294 + $0x110] sm:$0xff]
      %v572 = vld [vmem:[%s294 + $0x118] sm:$0xff]
      %v573 = vld [vmem:[%s294 + $0x120] sm:$0xff]
      %v574 = vld [vmem:[%s294 + $0x128] sm:$0xff]
      %v575 = vld [vmem:[%s294 + $0x130] sm:$0xff]
      %v576 = vld [vmem:[%s294 + $0x138] sm:$0xff]
      %v577 = vld [vmem:[%s294 + $0x140] sm:$0xff]
      %v578 = vld [vmem:[%s294 + $0x148] sm:$0xff]
      %v579 = vld [vmem:[%s294 + $0x150] sm:$0xff]
      %v580 = vld [vmem:[%s294 + $0x158] sm:$0xff]
      %v581 = vld [vmem:[%s294 + $0x160] sm:$0xff]
      %v582 = vld [vmem:[%s294 + $0x168] sm:$0xff]
      %v583 = vld [vmem:[%s294 + $0x170] sm:$0xff]
      %v584 = vld [vmem:[%s294 + $0x178] sm:$0xff]
      %v585 = vld [vmem:[%s294 + $0x180] sm:$0xff]
      %v586 = vld [vmem:[%s294 + $0x188] sm:$0xff]
      %v587 = vld [vmem:[%s294 + $0x190] sm:$0xff]
      %v588 = vld [vmem:[%s294 + $0x198] sm:$0xff]
      %v589 = vld [vmem:[%s294 + $0x1a0] sm:$0xff]
      %v590 = vld [vmem:[%s294 + $0x1a8] sm:$0xff]
      %v591 = vld [vmem:[%s294 + $0x1b0] sm:$0xff]
      %v592 = vld [vmem:[%s294 + $0x1b8] sm:$0xff]
      %v593 = vld [vmem:[%s294 + $0x1c0] sm:$0xff]
      %v594 = vld [vmem:[%s294 + $0x1c8] sm:$0xff]
      %v595 = vld [vmem:[%s294 + $0x1d0] sm:$0xff]
      %v596 = vld [vmem:[%s294 + $0x1d8] sm:$0xff]
      %v597 = vld [vmem:[%s294 + $0x1e0] sm:$0xff]
      %v598 = vld [vmem:[%s294 + $0x1e8] sm:$0xff]
      %v599 = vld [vmem:[%s294 + $0x1f0] sm:$0xff]
      %v600 = vld [vmem:[%s294 + $0x1f8] sm:$0xff]
      %v601 = vsel %vm409, %v473, %v537
      %v602 = vsel %vm410, %v474, %v538
      %v603 = vsel %vm411, %v475, %v539
      %v604 = vsel %vm412, %v476, %v540
      %v605 = vsel %vm413, %v477, %v541
      %v606 = vsel %vm414, %v478, %v542
      %v607 = vsel %vm415, %v479, %v543
      %v608 = vsel %vm416, %v480, %v544
      %v609 = vsel %vm417, %v481, %v545
      %v610 = vsel %vm418, %v482, %v546
      %v611 = vsel %vm419, %v483, %v547
      %v612 = vsel %vm420, %v484, %v548
      %v613 = vsel %vm421, %v485, %v549
      %v614 = vsel %vm422, %v486, %v550
      %v615 = vsel %vm423, %v487, %v551
      %v616 = vsel %vm424, %v488, %v552
      %v617 = vsel %vm425, %v489, %v553
      %v618 = vsel %vm426, %v490, %v554
      %v619 = vsel %vm427, %v491, %v555
      %v620 = vsel %vm428, %v492, %v556
      %v621 = vsel %vm429, %v493, %v557
      %v622 = vsel %vm430, %v494, %v558
      %v623 = vsel %vm431, %v495, %v559
      %v624 = vsel %vm432, %v496, %v560
      %v625 = vsel %vm433, %v497, %v561
      %v626 = vsel %vm434, %v498, %v562
      %v627 = vsel %vm435, %v499, %v563
      %v628 = vsel %vm436, %v500, %v564
      %v629 = vsel %vm437, %v501, %v565
      %v630 = vsel %vm438, %v502, %v566
      %v631 = vsel %vm439, %v503, %v567
      %v632 = vsel %vm440, %v504, %v568
      %v633 = vsel %vm441, %v505, %v569
      %v634 = vsel %vm442, %v506, %v570
      %v635 = vsel %vm443, %v507, %v571
      %v636 = vsel %vm444, %v508, %v572
      %v637 = vsel %vm445, %v509, %v573
      %v638 = vsel %vm446, %v510, %v574
      %v639 = vsel %vm447, %v511, %v575
      %v640 = vsel %vm448, %v512, %v576
      %v641 = vsel %vm449, %v513, %v577
      %v642 = vsel %vm450, %v514, %v578
      %v643 = vsel %vm451, %v515, %v579
      %v644 = vsel %vm452, %v516, %v580
      %v645 = vsel %vm453, %v517, %v581
      %v646 = vsel %vm454, %v518, %v582
      %v647 = vsel %vm455, %v519, %v583
      %v648 = vsel %vm456, %v520, %v584
      %v649 = vsel %vm457, %v521, %v585
      %v650 = vsel %vm458, %v522, %v586
      %v651 = vsel %vm459, %v523, %v587
      %v652 = vsel %vm460, %v524, %v588
      %v653 = vsel %vm461, %v525, %v589
      %v654 = vsel %vm462, %v526, %v590
      %v655 = vsel %vm463, %v527, %v591
      %v656 = vsel %vm464, %v528, %v592
      %v657 = vsel %vm465, %v529, %v593
      %v658 = vsel %vm466, %v530, %v594
      %v659 = vsel %vm467, %v531, %v595
      %v660 = vsel %vm468, %v532, %v596
      %v661 = vsel %vm469, %v533, %v597
      %v662 = vsel %vm470, %v534, %v598
      %v663 = vsel %vm471, %v535, %v599
      %v664 = vsel %vm472, %v536, %v600
      %vm665 = vcmask 130048
      %666 = vst.msk [vmem:[%s342] sm:$0xff] %vm665, %v601
      %667 = vst.msk [vmem:[%s342 + $0x8] sm:$0xff] %vm665, %v602
      %668 = vst.msk [vmem:[%s342 + $0x10] sm:$0xff] %vm665, %v603
      %669 = vst.msk [vmem:[%s342 + $0x18] sm:$0xff] %vm665, %v604
      %670 = vst.msk [vmem:[%s342 + $0x20] sm:$0xff] %vm665, %v605
      %671 = vst.msk [vmem:[%s342 + $0x28] sm:$0xff] %vm665, %v606
      %672 = vst.msk [vmem:[%s342 + $0x30] sm:$0xff] %vm665, %v607
      %673 = vst.msk [vmem:[%s342 + $0x38] sm:$0xff] %vm665, %v608
      %674 = vst.msk [vmem:[%s342 + $0x40] sm:$0xff] %vm665, %v609
      %675 = vst.msk [vmem:[%s342 + $0x48] sm:$0xff] %vm665, %v610
      %676 = vst.msk [vmem:[%s342 + $0x50] sm:$0xff] %vm665, %v611
      %677 = vst.msk [vmem:[%s342 + $0x58] sm:$0xff] %vm665, %v612
      %678 = vst.msk [vmem:[%s342 + $0x60] sm:$0xff] %vm665, %v613
      %679 = vst.msk [vmem:[%s342 + $0x68] sm:$0xff] %vm665, %v614
      %680 = vst.msk [vmem:[%s342 + $0x70] sm:$0xff] %vm665, %v615
      %681 = vst.msk [vmem:[%s342 + $0x78] sm:$0xff] %vm665, %v616
      %682 = vst.msk [vmem:[%s342 + $0x80] sm:$0xff] %vm665, %v617
      %683 = vst.msk [vmem:[%s342 + $0x88] sm:$0xff] %vm665, %v618
      %684 = vst.msk [vmem:[%s342 + $0x90] sm:$0xff] %vm665, %v619
      %685 = vst.msk [vmem:[%s342 + $0x98] sm:$0xff] %vm665, %v620
      %686 = vst.msk [vmem:[%s342 + $0xa0] sm:$0xff] %vm665, %v621
      %687 = vst.msk [vmem:[%s342 + $0xa8] sm:$0xff] %vm665, %v622
      %688 = vst.msk [vmem:[%s342 + $0xb0] sm:$0xff] %vm665, %v623
      %689 = vst.msk [vmem:[%s342 + $0xb8] sm:$0xff] %vm665, %v624
      %690 = vst.msk [vmem:[%s342 + $0xc0] sm:$0xff] %vm665, %v625
      %691 = vst.msk [vmem:[%s342 + $0xc8] sm:$0xff] %vm665, %v626
      %692 = vst.msk [vmem:[%s342 + $0xd0] sm:$0xff] %vm665, %v627
      %693 = vst.msk [vmem:[%s342 + $0xd8] sm:$0xff] %vm665, %v628
      %694 = vst.msk [vmem:[%s342 + $0xe0] sm:$0xff] %vm665, %v629
      %695 = vst.msk [vmem:[%s342 + $0xe8] sm:$0xff] %vm665, %v630
      %696 = vst.msk [vmem:[%s342 + $0xf0] sm:$0xff] %vm665, %v631
      %697 = vst.msk [vmem:[%s342 + $0xf8] sm:$0xff] %vm665, %v632
      %698 = vst.msk [vmem:[%s342 + $0x100] sm:$0xff] %vm665, %v633
      %699 = vst.msk [vmem:[%s342 + $0x108] sm:$0xff] %vm665, %v634
      %700 = vst.msk [vmem:[%s342 + $0x110] sm:$0xff] %vm665, %v635
      %701 = vst.msk [vmem:[%s342 + $0x118] sm:$0xff] %vm665, %v636
      %702 = vst.msk [vmem:[%s342 + $0x120] sm:$0xff] %vm665, %v637
      %703 = vst.msk [vmem:[%s342 + $0x128] sm:$0xff] %vm665, %v638
      %704 = vst.msk [vmem:[%s342 + $0x130] sm:$0xff] %vm665, %v639
      %705 = vst.msk [vmem:[%s342 + $0x138] sm:$0xff] %vm665, %v640
      %706 = vst.msk [vmem:[%s342 + $0x140] sm:$0xff] %vm665, %v641
      %707 = vst.msk [vmem:[%s342 + $0x148] sm:$0xff] %vm665, %v642
      %708 = vst.msk [vmem:[%s342 + $0x150] sm:$0xff] %vm665, %v643
      %709 = vst.msk [vmem:[%s342 + $0x158] sm:$0xff] %vm665, %v644
      %710 = vst.msk [vmem:[%s342 + $0x160] sm:$0xff] %vm665, %v645
      %711 = vst.msk [vmem:[%s342 + $0x168] sm:$0xff] %vm665, %v646
      %712 = vst.msk [vmem:[%s342 + $0x170] sm:$0xff] %vm665, %v647
      %713 = vst.msk [vmem:[%s342 + $0x178] sm:$0xff] %vm665, %v648
      %714 = vst.msk [vmem:[%s342 + $0x180] sm:$0xff] %vm665, %v649
      %715 = vst.msk [vmem:[%s342 + $0x188] sm:$0xff] %vm665, %v650
      %716 = vst.msk [vmem:[%s342 + $0x190] sm:$0xff] %vm665, %v651
      %717 = vst.msk [vmem:[%s342 + $0x198] sm:$0xff] %vm665, %v652
      %718 = vst.msk [vmem:[%s342 + $0x1a0] sm:$0xff] %vm665, %v653
      %719 = vst.msk [vmem:[%s342 + $0x1a8] sm:$0xff] %vm665, %v654
      %720 = vst.msk [vmem:[%s342 + $0x1b0] sm:$0xff] %vm665, %v655
      %721 = vst.msk [vmem:[%s342 + $0x1b8] sm:$0xff] %vm665, %v656
      %722 = vst.msk [vmem:[%s342 + $0x1c0] sm:$0xff] %vm665, %v657
      %723 = vst.msk [vmem:[%s342 + $0x1c8] sm:$0xff] %vm665, %v658
      %724 = vst.msk [vmem:[%s342 + $0x1d0] sm:$0xff] %vm665, %v659
      %725 = vst.msk [vmem:[%s342 + $0x1d8] sm:$0xff] %vm665, %v660
      %726 = vst.msk [vmem:[%s342 + $0x1e0] sm:$0xff] %vm665, %v661
      %727 = vst.msk [vmem:[%s342 + $0x1e8] sm:$0xff] %vm665, %v662
      %728 = vst.msk [vmem:[%s342 + $0x1f0] sm:$0xff] %vm665, %v663
      %729 = vst.msk [vmem:[%s342 + $0x1f8] sm:$0xff] %vm665, %v664
      %s730 = smul.u32 32, %s19
      %s731 = smul.u32 2, %s20
      %p732 = scmp.lt.s32.totalorder %s21, 1
      %s733 = scalar_select %p732, %s21, 1
      %p734 = scmp.lt.s32.totalorder %s730, 31
      %s735 = scalar_select %p734, %s730, 31
      %p736 = scmp.lt.s32.totalorder %s731, 1
      %s737 = scalar_select %p736, %s731, 1
      %s738 = smul.addr %s735, 2
      %s739 = sadd.s32 %s737, %s738
      %s740 = smul.addr %s733, 64
      %s741 = sadd.s32 %s739, %s740
      %s742 = smul.addr %s741, 8
      %s743 = scalar_lea.vmem %s3, %s742
      // Predicated region
      $region33: #{unmask_embed.1} parent=31 // pred_check
        %p744 = pneg %p143
      $region34: #{unmask_embed.1} parent=31 // pred_check_branch
        %746 = sbr.rel (%p744) target = $region36
      $region35: #{unmask_embed.1} parent=31 // pred_region
        %s747 = smul.u32 32, %s19
        %s748 = smul.u32 2, %s20
      $region36: #{unmask_embed.1} parent=31 // pred_fallthru
        _
    $region32: #{unmask_embed.1} parent=5 // pred_fallthru
      _
    %p749 = scmp.le.s32.totalorder 2, %s9
    // Predicated region
    $region37: #{unmask_embed.1} parent=5 // pred_check
      %p750 = pneg %p749
    $region38: #{unmask_embed.1} parent=5 // pred_check_branch
      %752 = sbr.rel (%p750) target = $region40
    $region39: #{unmask_embed.1} parent=5 // pred_region
      %s753 = ssub.s32 %s9, 2
      // Predicated region
      $region41: #{unmask_embed.1} parent=39 // pred_check
        %p754 = pneg %p149
      $region42: #{unmask_embed.1} parent=39 // pred_check_branch
        %756 = sbr.rel (%p754) target = $region44
      $region43: #{unmask_embed.1} parent=39 // pred_region
        %s757 = smul.u32 32, %s22
        %s758 = smul.u32 2, %s23
        %p759 = scmp.lt.s32.totalorder %s24, 1
        %s760 = scalar_select %p759, %s24, 1
        %p761 = scmp.lt.s32.totalorder %s757, 31
        %s762 = scalar_select %p761, %s757, 31
        %p763 = scmp.lt.s32.totalorder %s758, 1
        %s764 = scalar_select %p763, %s758, 1
        %s765 = smul.addr %s762, 2
        %s766 = sadd.s32 %s764, %s765
        %s767 = smul.addr %s760, 64
        %s768 = sadd.s32 %s766, %s767
        %s769 = smul.addr %s768, 8
        %s770 = scalar_lea.vmem %s3, %s769
      $region44: #{unmask_embed.1} parent=39 // pred_fallthru
        _
    $region40: #{unmask_embed.1} parent=5 // pred_fallthru
      _
  $region6: #{unmask_embed.1} parent=0 // loop_footer
    %s13 = sadd.s32 1, %s9
  $region7: #{unmask_embed.1} parent=0 // loop_footer_branch
    %8 = sbr.rel target = $region3
  $region8: #{unmask_embed.1} parent=0 // loop_exit
    _

</llo_original>
